<compile_context>
chip_gen: v7x
topology: tpu7x:2x2x1
jax: 0.10.0
libtpu: 0.0.40
codegen_flags: <defaults>
</compile_context>

<pallas_src>
import functools

import jax
import jax.numpy as jnp
from jax import lax
from jax.experimental import pallas as pl
from jax.experimental.pallas import tpu as pltpu


def _recip(x):
    # EUP approximate reciprocal + one Newton-Raphson step -> ~f32 exact, no VALU divide chain.
    r = pl.reciprocal(x, approx=True)
    return r * (2.0 - x * r)


# ----------------------------------------------------------------------------
# Pallas kernel: one grid step == `batch_block` batch elements.
# Layout is channels-first: the x tile is (C, S) with S = batch_block*HW on the lane axis.
# ----------------------------------------------------------------------------
def _efficient_attention_kernel(
    x_ref,      # (1, C, S)
    wqkv_ref,   # (P, C)   fused [K | Q | V] projection, pre-transposed, activation dtype
    bqkv_ref,   # (P, 1)   f32
    wr_ref,     # (Vc, C)  reprojection weight, activation dtype
    br_ref,     # (C, 1)   f32
    o_ref,      # (1, C, S)
    *,
    head_count,
    key_channels,
    value_channels,
    batch_block,
    hw,
):
    Kc = key_channels
    Vc = value_channels
    hk = Kc // head_count
    hv = Vc // head_count
    C = x_ref.shape[1]

    x_all = x_ref[0]                                   # (C, S), activation dtype (no upcast)

    # --- fused K|Q|V projection for all heads and the whole batch block ------------------
    # (P, C) @ (C, S) -> (P, S); widest lane dim, f32 accumulation on the MXU.
    qkv = jnp.dot(wqkv_ref[...], x_all, preferred_element_type=jnp.float32)
    qkv = qkv + bqkv_ref[...]                          # (P, S) f32

    k_all = qkv[:Kc, :]
    q_all = qkv[Kc:2 * Kc, :]
    v_all = qkv[2 * Kc:, :]

    wr3 = wr_ref[...].reshape(head_count, hv, C)       # free leading-dim split
    br = br_ref[...]                                   # (C, 1) f32

    for b in range(batch_block):                       # static, small (keep batch_block <= ~8)
        lo, hi = b * hw, (b + 1) * hw                  # lane-tile aligned (hw % 128 == 0)

        # key: softmax over the spatial (lane) axis    (torch dim=2), per batch element.
        k = k_all[:, lo:hi]                            # (Kc, HW) f32
        k = jnp.exp(k - jnp.max(k, axis=1, keepdims=True))
        k = k * _recip(jnp.sum(k, axis=1, keepdims=True))

        # query: softmax over the per-head channel (sublane) axis   (torch dim=1).
        q3 = q_all[:, lo:hi].reshape(head_count, hk, hw)   # (H, hk, HW)
        q3 = jnp.exp(q3 - jnp.max(q3, axis=1, keepdims=True))
        q3 = q3 * _recip(jnp.sum(q3, axis=1, keepdims=True))

        k3 = k.reshape(head_count, hk, hw)                 # (H, hk, HW)
        v3 = v_all[:, lo:hi].reshape(head_count, hv, hw)   # (H, hv, HW)

        # context[h, kc, vc] = sum_hw k3[h,kc,hw] * v3[h,vc,hw]      (batched over heads)
        context = lax.dot_general(
            k3, v3, (((2,), (2,)), ((0,), (0,))),
            preferred_element_type=jnp.float32)            # (H, hk, hv)

        # fold the reprojection weight into the context (batched over heads):
        # m3[h, kc, c] = sum_vc context[h, kc, vc] * wr3[h, vc, c]
        m3 = lax.dot_general(
            context, wr3, (((2,), (1,)), ((0,), (0,))),
            preferred_element_type=jnp.float32)            # (H, hk, C)

        # single fused reprojection for ALL heads:
        # contrib[c, hw] = sum_{h,kc} m3[h, kc, c] * q3[h, kc, hw]
        m_t = m3.reshape(Kc, C)                            # head-major stacking (free)
        q_s = q3.reshape(Kc, hw)                           # matches m_t ordering (free)
        contrib = lax.dot_general(
            m_t, q_s, (((0,), (0,)), ((), ())),
            preferred_element_type=jnp.float32)            # (C, HW)

        out = x_all[:, lo:hi].astype(jnp.float32) + br + contrib
        o_ref[0, :, lo:hi] = out.astype(o_ref.dtype)


# ----------------------------------------------------------------------------
# Wrapper.
#   batch_block == 1: NCHW -> (N, C, HW) is a free reshape (no transpose), grid=(N,) parallel.
#   batch_block  > 1: one XLA transpose so the kernel sees lane-fused (C, batch_block*HW) tiles
#                     (v5e/v6e tuning knob to fill the MXU / amortize grid-step overhead).
# ----------------------------------------------------------------------------
def efficient_attention(x_nchw, params, *, head_count, batch_block=1):
    N, C, H, W = x_nchw.shape
    HW = H * W
    assert N % batch_block == 0
    S = batch_block * HW
    n_blocks = N // batch_block
    act_dtype = x_nchw.dtype

    wk, bk = params["wk"], params["bk"]   # (C, Kc), (Kc,)
    wq, bq = params["wq"], params["bq"]   # (C, Kc), (Kc,)
    wv, bv = params["wv"], params["bv"]   # (C, Vc), (Vc,)
    wr, br = params["wr"], params["br"]   # (Vc, C), (C,)

    Kc = wk.shape[1]
    Vc = wv.shape[1]
    P = 2 * Kc + Vc

    if batch_block == 1:
        x = x_nchw.reshape(N, C, HW)                                  # free (contiguity matches)
    else:
        x = (x_nchw.reshape(n_blocks, batch_block, C, HW)
                   .transpose(0, 2, 1, 3)
                   .reshape(n_blocks, C, S))

    # fused, pre-transposed projection weight / bias:  [K | Q | V].
    # MXU operands stay in the activation dtype; biases / softmax stay f32.
    w_qkv = jnp.concatenate([wk.T, wq.T, wv.T], axis=0).astype(act_dtype)          # (P, C)
    b_qkv = jnp.concatenate([bk, bq, bv], axis=0).reshape(P, 1).astype(jnp.float32)
    wr_k = wr.astype(act_dtype)                                                     # (Vc, C)
    br_2d = br.reshape(C, 1).astype(jnp.float32)

    kernel = functools.partial(
        _efficient_attention_kernel,
        head_count=head_count, key_channels=Kc, value_channels=Vc,
        batch_block=batch_block, hw=HW)

    itemsize = jnp.dtype(act_dtype).itemsize

    # VMEM guard (important at production image sizes): double-buffered x/out blocks + weights +
    # a fat margin for the f32 qkv/out intermediates; capped below v7x's 64 MiB physical VMEM.
    io_block = C * S * itemsize
    w_bytes = (P * C + Vc * C) * itemsize + (P + C) * 4
    vmem_need = 4 * io_block + 4 * w_bytes + 4 * (P + 4 * C) * S * 4 + (4 << 20)
    vmem_limit = int(min(max(vmem_need, 32 << 20), 60 << 20))

    hk, hv = Kc // head_count, Vc // head_count
    flops_per_elem = 2 * (P * C * HW                      # fused projection
                          + head_count * hk * hv * HW     # context
                          + head_count * hk * hv * C      # wr fold
                          + Kc * C * HW)                  # fused reprojection
    cost = pl.CostEstimate(
        flops=int(N * flops_per_elem),
        transcendentals=int(N * 2 * Kc * HW),
        bytes_accessed=int(2 * N * C * HW * itemsize + w_bytes))

    full = lambda shape: pl.BlockSpec(shape, lambda b: (0,) * len(shape))

    out = pl.pallas_call(
        kernel,
        out_shape=jax.ShapeDtypeStruct((n_blocks, C, S), act_dtype),
        grid_spec=pltpu.PrefetchScalarGridSpec(
            num_scalar_prefetch=0,
            grid=(n_blocks,),
            in_specs=[
                pl.BlockSpec((1, C, S), lambda b: (b, 0, 0)),   # x
                full((P, C)),                                   # fused W_qkv^T (constant -> no re-DMA)
                full((P, 1)),                                   # fused b_qkv
                full((Vc, C)),                                  # wr
                full((C, 1)),                                   # br
            ],
            out_specs=pl.BlockSpec((1, C, S), lambda b: (b, 0, 0)),
        ),
        compiler_params=pltpu.CompilerParams(
            dimension_semantics=("parallel",),
            vmem_limit_bytes=vmem_limit,
        ),
        cost_estimate=cost,
    )(x, w_qkv, b_qkv, wr_k, br_2d)

    if batch_block == 1:
        return out.reshape(N, C, H, W)
    return (out.reshape(n_blocks, C, batch_block, HW)
               .transpose(0, 2, 1, 3)
               .reshape(N, C, H, W))


# ----------------------------------------------------------------------------
# Pure-JAX reference mirroring the PyTorch forward (channels-first).
# ----------------------------------------------------------------------------
def efficient_attention_ref(x_nchw, params, *, head_count):
    N, C, H, W = x_nchw.shape
    HW = H * W
    x = x_nchw.reshape(N, C, HW)

    keys = jnp.einsum("nch,ck->nkh", x, params["wk"]) + params["bk"][None, :, None]
    queries = jnp.einsum("nch,ck->nkh", x, params["wq"]) + params["bq"][None, :, None]
    values = jnp.einsum("nch,cv->nvh", x, params["wv"]) + params["bv"][None, :, None]

    hk = keys.shape[1] // head_count
    hv = values.shape[1] // head_count

    attended = []
    for i in range(head_count):
        key = jax.nn.softmax(keys[:, i * hk:(i + 1) * hk, :], axis=2)
        query = jax.nn.softmax(queries[:, i * hk:(i + 1) * hk, :], axis=1)
        value = values[:, i * hv:(i + 1) * hv, :]
        context = jnp.einsum("nkh,nvh->nkv", key, value)
        att = jnp.einsum("nkv,nkh->nvh", context, query)
        attended.append(att)
    agg = jnp.concatenate(attended, axis=1)  # (N, Vc, HW)

    out = jnp.einsum("nvh,vc->nch", agg, params["wr"]) + params["br"][None, :, None]
    return (out + x).reshape(N, C, H, W)


# ----------------------------------------------------------------------------
# Deterministic parameter init (synthetic — not a checkpoint load).
# ----------------------------------------------------------------------------
def init_params(key, in_channels, key_channels, value_channels):
    ks = jax.random.split(key, 8)
    s = 0.1
    return {
        "wk": s * jax.random.normal(ks[0], (in_channels, key_channels), jnp.float32),
        "bk": s * jax.random.normal(ks[1], (key_channels,), jnp.float32),
        "wq": s * jax.random.normal(ks[2], (in_channels, key_channels), jnp.float32),
        "bq": s * jax.random.normal(ks[3], (key_channels,), jnp.float32),
        "wv": s * jax.random.normal(ks[4], (in_channels, value_channels), jnp.float32),
        "bv": s * jax.random.normal(ks[5], (value_channels,), jnp.float32),
        "wr": s * jax.random.normal(ks[6], (value_channels, in_channels), jnp.float32),
        "br": s * jax.random.normal(ks[7], (in_channels,), jnp.float32),
    }


if __name__ == "__main__":
    # Small, module-consistent shapes.
    batch = 2
    in_channels = 32
    key_channels = 32
    value_channels = 32
    head_count = 2
    H = W = 16

    root = jax.random.PRNGKey(0)
    k_x, k_p = jax.random.split(root)
    x = jax.random.normal(k_x, (batch, in_channels, H, W), jnp.float32)
    params = init_params(k_p, in_channels, key_channels, value_channels)

    ref = efficient_attention_ref(x, params, head_count=head_count)

    # v7x-friendly default: batch_block=1 keeps grid=(N,) "parallel" with >= 2 steps.
    out = efficient_attention(x, params, head_count=head_count, batch_block=1)
    out = jax.block_until_ready(out)
    assert out.shape == ref.shape == x.shape
    assert jnp.allclose(out, ref, atol=2e-4, rtol=2e-4), float(jnp.max(jnp.abs(out - ref)))

    # v5e/v6e tuning knob: QKV projection fused across the batch block on the lane axis.
    out_bb = efficient_attention(x, params, head_count=head_count, batch_block=2)
    out_bb = jax.block_until_ready(out_bb)
    assert jnp.allclose(out_bb, ref, atol=2e-4, rtol=2e-4), float(jnp.max(jnp.abs(out_bb - ref)))

    print("KERNEL_OK")
</pallas_src>

<mosaic_0001>
module attributes {stable_mosaic.version = 11 : i64} {
  func.func @_efficient_attention_kernel(%arg0: i32, %arg1: memref<1x32x256xf32, #tpu.memory_space<vmem>>, %arg2: memref<96x32xf32, #tpu.memory_space<vmem>>, %arg3: memref<96x1xf32, #tpu.memory_space<vmem>>, %arg4: memref<32x32xf32, #tpu.memory_space<vmem>>, %arg5: memref<32x1xf32, #tpu.memory_space<vmem>>, %arg6: memref<1x32x256xf32, #tpu.memory_space<vmem>>) attributes {dimension_semantics = [#tpu.dimension_semantics<parallel>], iteration_bounds = array<i64: 2>, scalar_prefetch = 0 : i64, scratch_operands = 0 : i64, tpu.core_type = #tpu.core_type<tc>, window_params = [{transform_indices = @transform_0, window_bounds = array<i64: 1, 32, 256>}, {pipeline_mode = #tpu.pipeline_mode<synchronous>, transform_indices = @transform_1, window_bounds = array<i64: 96, 32>}, {pipeline_mode = #tpu.pipeline_mode<synchronous>, transform_indices = @transform_2, window_bounds = array<i64: 96, 1>}, {pipeline_mode = #tpu.pipeline_mode<synchronous>, transform_indices = @transform_3, window_bounds = array<i64: 32, 32>}, {pipeline_mode = #tpu.pipeline_mode<synchronous>, transform_indices = @transform_4, window_bounds = array<i64: 32, 1>}, {transform_indices = @transform_5, window_bounds = array<i64: 1, 32, 256>}]} {
    %c0 = arith.constant 0 : index
    %c0_0 = arith.constant 0 : index
    %c0_1 = arith.constant 0 : index
    %0 = vector.load %arg1[%c0, %c0_0, %c0_1] : memref<1x32x256xf32, #tpu.memory_space<vmem>>, vector<1x32x256xf32>
    %1 = vector.shape_cast %0 : vector<1x32x256xf32> to vector<32x256xf32>
    %c0_2 = arith.constant 0 : index
    %c0_3 = arith.constant 0 : index
    %2 = vector.load %arg2[%c0_2, %c0_3] : memref<96x32xf32, #tpu.memory_space<vmem>>, vector<96x32xf32>
    %cst = arith.constant dense<0.000000e+00> : vector<96x256xf32>
    %3 = tpu.matmul %2, %1, %cst {dimension_numbers = #tpu.dot_dimension_numbers<[1], [0], [0], [1], [0, 0, 1, 1], [], []>} : vector<96x32xf32>, vector<32x256xf32>, vector<96x256xf32> -> vector<96x256xf32>
    %c0_4 = arith.constant 0 : index
    %c0_5 = arith.constant 0 : index
    %4 = vector.load %arg3[%c0_4, %c0_5] : memref<96x1xf32, #tpu.memory_space<vmem>>, vector<96x1xf32>
    %5 = vector.broadcast %4 : vector<96x1xf32> to vector<96x256xf32>
    %6 = arith.addf %3, %5 : vector<96x256xf32>
    %7 = vector.extract_strided_slice %6 {offsets = [0, 0], sizes = [32, 256], strides = [1, 1]} : vector<96x256xf32> to vector<32x256xf32>
    %8 = vector.extract_strided_slice %6 {offsets = [32, 0], sizes = [32, 256], strides = [1, 1]} : vector<96x256xf32> to vector<32x256xf32>
    %9 = vector.extract_strided_slice %6 {offsets = [64, 0], sizes = [32, 256], strides = [1, 1]} : vector<96x256xf32> to vector<32x256xf32>
    %c0_6 = arith.constant 0 : index
    %c0_7 = arith.constant 0 : index
    %10 = vector.load %arg4[%c0_6, %c0_7] : memref<32x32xf32, #tpu.memory_space<vmem>>, vector<32x32xf32>
    %11 = vector.shape_cast %10 : vector<32x32xf32> to vector<2x16x32xf32>
    %c0_8 = arith.constant 0 : index
    %c0_9 = arith.constant 0 : index
    %12 = vector.load %arg5[%c0_8, %c0_9] : memref<32x1xf32, #tpu.memory_space<vmem>>, vector<32x1xf32>
    %cst_10 = arith.constant dense<0xFF800000> : vector<32xf32>
    %13 = vector.multi_reduction <maximumf>, %7, %cst_10 [1] : vector<32x256xf32> to vector<32xf32>
    %14 = vector.shape_cast %13 : vector<32xf32> to vector<32x1xf32>
    %15 = vector.broadcast %14 : vector<32x1xf32> to vector<32x256xf32>
    %16 = arith.subf %7, %15 : vector<32x256xf32>
    %17 = math.exp %16 : vector<32x256xf32>
    %cst_11 = arith.constant dense<0.000000e+00> : vector<32xf32>
    %18 = vector.multi_reduction <add>, %17, %cst_11 [1] : vector<32x256xf32> to vector<32xf32>
    %19 = vector.shape_cast %18 : vector<32xf32> to vector<32x1xf32>
    %20 = tpu.reciprocal %19 {approx = true} : vector<32x1xf32> -> vector<32x1xf32>
    %21 = arith.mulf %19, %20 : vector<32x1xf32>
    %cst_12 = arith.constant 2.000000e+00 : f32
    %22 = vector.broadcast %cst_12 : f32 to vector<32x1xf32>
    %23 = arith.subf %22, %21 : vector<32x1xf32>
    %24 = arith.mulf %20, %23 : vector<32x1xf32>
    %25 = vector.broadcast %24 : vector<32x1xf32> to vector<32x256xf32>
    %26 = arith.mulf %17, %25 : vector<32x256xf32>
    %27 = vector.shape_cast %8 : vector<32x256xf32> to vector<2x16x256xf32>
    %cst_13 = arith.constant dense<0xFF800000> : vector<2x256xf32>
    %28 = vector.multi_reduction <maximumf>, %27, %cst_13 [1] : vector<2x16x256xf32> to vector<2x256xf32>
    %29 = vector.shape_cast %28 : vector<2x256xf32> to vector<2x1x256xf32>
    %30 = vector.broadcast %29 : vector<2x1x256xf32> to vector<2x16x256xf32>
    %31 = arith.subf %27, %30 : vector<2x16x256xf32>
    %32 = math.exp %31 : vector<2x16x256xf32>
    %cst_14 = arith.constant dense<0.000000e+00> : vector<2x256xf32>
    %33 = vector.multi_reduction <add>, %32, %cst_14 [1] : vector<2x16x256xf32> to vector<2x256xf32>
    %34 = vector.shape_cast %33 : vector<2x256xf32> to vector<2x1x256xf32>
    %35 = tpu.reciprocal %34 {approx = true} : vector<2x1x256xf32> -> vector<2x1x256xf32>
    %36 = arith.mulf %34, %35 : vector<2x1x256xf32>
    %cst_15 = arith.constant 2.000000e+00 : f32
    %37 = vector.broadcast %cst_15 : f32 to vector<2x1x256xf32>
    %38 = arith.subf %37, %36 : vector<2x1x256xf32>
    %39 = arith.mulf %35, %38 : vector<2x1x256xf32>
    %40 = vector.broadcast %39 : vector<2x1x256xf32> to vector<2x16x256xf32>
    %41 = arith.mulf %32, %40 : vector<2x16x256xf32>
    %42 = vector.shape_cast %26 : vector<32x256xf32> to vector<2x16x256xf32>
    %43 = vector.shape_cast %9 : vector<32x256xf32> to vector<2x16x256xf32>
    %cst_16 = arith.constant dense<0.000000e+00> : vector<2x16x16xf32>
    %44 = tpu.matmul %42, %43, %cst_16 {dimension_numbers = #tpu.dot_dimension_numbers<[2], [2], [1], [1], [0, 0, 0, 1, 1, 1], [0], [0]>} : vector<2x16x256xf32>, vector<2x16x256xf32>, vector<2x16x16xf32> -> vector<2x16x16xf32>
    %cst_17 = arith.constant dense<0.000000e+00> : vector<2x16x32xf32>
    %45 = tpu.matmul %44, %11, %cst_17 {dimension_numbers = #tpu.dot_dimension_numbers<[2], [1], [1], [2], [0, 0, 0, 1, 1, 2], [0], [0]>} : vector<2x16x16xf32>, vector<2x16x32xf32>, vector<2x16x32xf32> -> vector<2x16x32xf32>
    %46 = vector.shape_cast %45 : vector<2x16x32xf32> to vector<32x32xf32>
    %47 = vector.shape_cast %41 : vector<2x16x256xf32> to vector<32x256xf32>
    %cst_18 = arith.constant dense<0.000000e+00> : vector<32x256xf32>
    %48 = tpu.matmul %46, %47, %cst_18 {dimension_numbers = #tpu.dot_dimension_numbers<[0], [0], [1], [1], [0, 1, 1, 1], [], []>} : vector<32x32xf32>, vector<32x256xf32>, vector<32x256xf32> -> vector<32x256xf32>
    %49 = vector.broadcast %12 : vector<32x1xf32> to vector<32x256xf32>
    %50 = arith.addf %1, %49 : vector<32x256xf32>
    %51 = arith.addf %50, %48 : vector<32x256xf32>
    %c0_19 = arith.constant 0 : index
    %c0_20 = arith.constant 0 : index
    %c0_21 = arith.constant 0 : index
    %52 = vector.load %arg6[%c0_19, %c0_20, %c0_21] : memref<1x32x256xf32, #tpu.memory_space<vmem>>, vector<1x32x256xf32>
    %53 = vector.shape_cast %52 : vector<1x32x256xf32> to vector<32x256xf32>
    %54 = vector.shape_cast %51 : vector<32x256xf32> to vector<1x32x256xf32>
    tpu.vector_store %arg6[%c0_19, %c0_20, %c0_21], %54 {strides = array<i32>} : memref<1x32x256xf32, #tpu.memory_space<vmem>>, vector<1x32x256xf32>,
    return
  }
  func.func @transform_0(%arg0: i32) -> (i32, i32, i32) {
    %c0_i32 = arith.constant 0 : i32
    %c0_i32_0 = arith.constant 0 : i32
    %c0_i32_1 = arith.constant 0 : i32
    return %arg0, %c0_i32, %c0_i32_0 : i32, i32, i32
  }
  func.func @transform_1(%arg0: i32) -> (i32, i32) {
    %c0_i32 = arith.constant 0 : i32
    %c0_i32_0 = arith.constant 0 : i32
    %c0_i32_1 = arith.constant 0 : i32
    return %c0_i32, %c0_i32_0 : i32, i32
  }
  func.func @transform_2(%arg0: i32) -> (i32, i32) {
    %c0_i32 = arith.constant 0 : i32
    %c0_i32_0 = arith.constant 0 : i32
    %c0_i32_1 = arith.constant 0 : i32
    return %c0_i32, %c0_i32_0 : i32, i32
  }
  func.func @transform_3(%arg0: i32) -> (i32, i32) {
    %c0_i32 = arith.constant 0 : i32
    %c0_i32_0 = arith.constant 0 : i32
    %c0_i32_1 = arith.constant 0 : i32
    return %c0_i32, %c0_i32_0 : i32, i32
  }
  func.func @transform_4(%arg0: i32) -> (i32, i32) {
    %c0_i32 = arith.constant 0 : i32
    %c0_i32_0 = arith.constant 0 : i32
    %c0_i32_1 = arith.constant 0 : i32
    return %c0_i32, %c0_i32_0 : i32, i32
  }
  func.func @transform_5(%arg0: i32) -> (i32, i32, i32) {
    %c0_i32 = arith.constant 0 : i32
    %c0_i32_0 = arith.constant 0 : i32
    %c0_i32_1 = arith.constant 0 : i32
    return %arg0, %c0_i32, %c0_i32_0 : i32, i32, i32
  }
}

</mosaic_0001>

<llo_original>
// kernel: tpu_custom_call.1
$region0: #{tpu_custom_call.1}
  #allocation0 [shape = 'u32[]', space=smem, size = 0x4, offset = 0x4, fixed_abs, tag = 'smem constant byte address 0x4 - core index']
  #allocation1 [shape = 'u32[144,128]{1,0:T(1,128)}', space=vmem, size = 0x12000, scoped, tag = 'internal scratch']
  %s0 = inlined_call_operand.vmem [shape: f32[2,32,256], index: 0, kind: input, shape index: {}]
  %s1 = inlined_call_operand.vmem [shape: f32[96,32], index: 1, kind: input, shape index: {}]
  %s2 = inlined_call_operand.vmem [shape: f32[96,1], index: 2, kind: input, shape index: {}]
  %s3 = inlined_call_operand.vmem [shape: f32[32,32], index: 3, kind: input, shape index: {}]
  %s4 = inlined_call_operand.vmem [shape: f32[32,1], index: 4, kind: input, shape index: {}]
  %s5 = inlined_call_operand.hbm [shape: f32[2,32,256], index: 5, kind: output, shape index: {}]
  %s6 = sld [smem:[#allocation0]]
  $region53: #{tpu_custom_call.1} parent=0
    _
  %s8 = ssub.s32 1, %s6
  %s9 = scalar_select 0, %s8, %s6
  $region1: #{tpu_custom_call.1} parent=0
    #allocation2 [shape = 'u8[65536]{0}', space=vmem, size = 0x10000, scoped, tag = 'output window, operand 0']
    #allocation3 [shape = 's32[2]{0}', space=sflag, size = 0x8, scoped, tag = 'scoped memory for tpu_custom_call.1']
    %10 = vsyncpa [#allocation3], 0
    %s11 = scalar_lea.sflag [#allocation3], 1
    %12 = vsyncpa %s11, 0
    loop: start=0, step=1, limit=4
    $region2: #{tpu_custom_call.1} parent=1 // loop_pre_header
      _
    $region3: #{tpu_custom_call.1} parent=1 // loop_header
      %s14 = sphi 0, %s18
      %p15 = scmp.ge.s32.totalorder %s14, 4
      %s24 = sphi 0, %s26
      %s27 = sphi 0, %s24
      %s28 = sphi 0, %s27
      %s44 = sphi 0, %s28
      %s48 = sphi 0, %s48
      %s50 = sphi 0, %s48
      %s51 = sphi 0, %s50
      %s65 = sphi 0, %s51
      %s69 = sphi 0, %s69
      %s71 = sphi 0, %s69
      %s72 = sphi 0, %s71
      %s86 = sphi 0, %s72
      %s90 = sphi 0, %s90
      %s92 = sphi 0, %s90
      %s93 = sphi 0, %s92
      %s107 = sphi 0, %s93
      %s111 = sphi 0, %s111
      %s113 = sphi 0, %s111
      %s114 = sphi 0, %s113
      %s128 = sphi 0, %s114
      %s134 = sphi 0, %s136
      %s137 = sphi 0, %s134
      %s138 = sphi 0, %s137
      %s154 = sphi 0, %s138
    $region4: #{tpu_custom_call.1} parent=1 // loop_header_branch
      %17 = sbr.rel (%p15) target = $region8
    $region5: #{tpu_custom_call.1} parent=1 // loop_body
      %s19 = ssub.s32 %s14, 1
      %s20 = ssub.s32 %s14, 2
      %s21 = sadd.s32 %s14, 1
      %s22 = ssub.s32 %s14, %s21
      %p23 = scmp.eq.s32.totalorder %s22, 0
      %s25 = sadd.s32 %s24, 1
      %s26 = scalar_select %p23, %s24, %s25
      %p29 = pneg %p23
      %p30 = scmp.eq.s32.totalorder %s14, 1
      %p31 = por %p29, %p30
      %p32 = scmp.ne.s32.totalorder %s24, %s27
      %p33 = scmp.eq.s32.totalorder %s14, 0
      %p34 = por %p32, %p33
      %p35 = scmp.ne.s32.totalorder %s24, %s27
      %p36 = scmp.eq.s32.totalorder %s19, 1
      %p37 = por %p35, %p36
      %p38 = scmp.ne.s32.totalorder %s27, %s28
      %p39 = scmp.eq.s32.totalorder %s19, 0
      %p40 = por %p38, %p39
      %p41 = scmp.ne.s32.totalorder %s27, %s28
      %p42 = scmp.eq.s32.totalorder %s20, 1
      %p43 = por %p41, %p42
      %p45 = scmp.ne.s32.totalorder %s28, %s44
      %p46 = scmp.eq.s32.totalorder %s20, 0
      %p47 = por %p45, %p46
      %s49 = sadd.s32 %s48, 1
      %p52 = scmp.eq.s32.totalorder %s14, 1
      %p53 = scmp.ne.s32.totalorder %s48, %s50
      %p54 = scmp.eq.s32.totalorder %s14, 0
      %p55 = por %p53, %p54
      %p56 = scmp.ne.s32.totalorder %s48, %s50
      %p57 = scmp.eq.s32.totalorder %s19, 1
      %p58 = por %p56, %p57
      %p59 = scmp.ne.s32.totalorder %s50, %s51
      %p60 = scmp.eq.s32.totalorder %s19, 0
      %p61 = por %p59, %p60
      %p62 = scmp.ne.s32.totalorder %s50, %s51
      %p63 = scmp.eq.s32.totalorder %s20, 1
      %p64 = por %p62, %p63
      %p66 = scmp.ne.s32.totalorder %s51, %s65
      %p67 = scmp.eq.s32.totalorder %s20, 0
      %p68 = por %p66, %p67
      %s70 = sadd.s32 %s69, 1
      %p73 = scmp.eq.s32.totalorder %s14, 1
      %p74 = scmp.ne.s32.totalorder %s69, %s71
      %p75 = scmp.eq.s32.totalorder %s14, 0
      %p76 = por %p74, %p75
      %p77 = scmp.ne.s32.totalorder %s69, %s71
      %p78 = scmp.eq.s32.totalorder %s19, 1
      %p79 = por %p77, %p78
      %p80 = scmp.ne.s32.totalorder %s71, %s72
      %p81 = scmp.eq.s32.totalorder %s19, 0
      %p82 = por %p80, %p81
      %p83 = scmp.ne.s32.totalorder %s71, %s72
      %p84 = scmp.eq.s32.totalorder %s20, 1
      %p85 = por %p83, %p84
      %p87 = scmp.ne.s32.totalorder %s72, %s86
      %p88 = scmp.eq.s32.totalorder %s20, 0
      %p89 = por %p87, %p88
      %s91 = sadd.s32 %s90, 1
      %p94 = scmp.eq.s32.totalorder %s14, 1
      %p95 = scmp.ne.s32.totalorder %s90, %s92
      %p96 = scmp.eq.s32.totalorder %s14, 0
      %p97 = por %p95, %p96
      %p98 = scmp.ne.s32.totalorder %s90, %s92
      %p99 = scmp.eq.s32.totalorder %s19, 1
      %p100 = por %p98, %p99
      %p101 = scmp.ne.s32.totalorder %s92, %s93
      %p102 = scmp.eq.s32.totalorder %s19, 0
      %p103 = por %p101, %p102
      %p104 = scmp.ne.s32.totalorder %s92, %s93
      %p105 = scmp.eq.s32.totalorder %s20, 1
      %p106 = por %p104, %p105
      %p108 = scmp.ne.s32.totalorder %s93, %s107
      %p109 = scmp.eq.s32.totalorder %s20, 0
      %p110 = por %p108, %p109
      %s112 = sadd.s32 %s111, 1
      %p115 = scmp.eq.s32.totalorder %s14, 1
      %p116 = scmp.ne.s32.totalorder %s111, %s113
      %p117 = scmp.eq.s32.totalorder %s14, 0
      %p118 = por %p116, %p117
      %p119 = scmp.ne.s32.totalorder %s111, %s113
      %p120 = scmp.eq.s32.totalorder %s19, 1
      %p121 = por %p119, %p120
      %p122 = scmp.ne.s32.totalorder %s113, %s114
      %p123 = scmp.eq.s32.totalorder %s19, 0
      %p124 = por %p122, %p123
      %p125 = scmp.ne.s32.totalorder %s113, %s114
      %p126 = scmp.eq.s32.totalorder %s20, 1
      %p127 = por %p125, %p126
      %p129 = scmp.ne.s32.totalorder %s114, %s128
      %p130 = scmp.eq.s32.totalorder %s20, 0
      %p131 = por %p129, %p130
      %s132 = ssub.s32 %s14, %s21
      %p133 = scmp.eq.s32.totalorder %s132, 0
      %s135 = sadd.s32 %s134, 1
      %s136 = scalar_select %p133, %s134, %s135
      %p139 = pneg %p133
      %p140 = scmp.eq.s32.totalorder %s14, 1
      %p141 = por %p139, %p140
      %p142 = scmp.ne.s32.totalorder %s134, %s137
      %p143 = scmp.eq.s32.totalorder %s14, 0
      %p144 = por %p142, %p143
      %p145 = scmp.ne.s32.totalorder %s134, %s137
      %p146 = scmp.eq.s32.totalorder %s19, 1
      %p147 = por %p145, %p146
      %p148 = scmp.ne.s32.totalorder %s137, %s138
      %p149 = scmp.eq.s32.totalorder %s19, 0
      %p150 = por %p148, %p149
      %p151 = scmp.ne.s32.totalorder %s137, %s138
      %p152 = scmp.eq.s32.totalorder %s20, 1
      %p153 = por %p151, %p152
      %p155 = scmp.ne.s32.totalorder %s138, %s154
      %p156 = scmp.eq.s32.totalorder %s20, 0
      %p157 = por %p155, %p156
      %p158 = scmp.le.s32.totalorder 1, %s14
      %p159 = scmp.lt.s32.totalorder %s14, 3
      %p160 = pnand %p158, %p159
      %p161 = pneg %p160
      // Predicated region
      $region9: #{tpu_custom_call.1} parent=5 // pred_check
        _
      $region10: #{tpu_custom_call.1} parent=5 // pred_check_branch
        %163 = sbr.rel (%p160) target = $region12
      $region11: #{tpu_custom_call.1} parent=5 // pred_region
        %s164 = ssub.s32 %s14, 1
        // Predicated region
        $region13: #{tpu_custom_call.1} parent=11 // pred_check
          %p165 = pneg %p61
        $region14: #{tpu_custom_call.1} parent=11 // pred_check_branch
          %167 = sbr.rel (%p165) target = $region16
        $region15: #{tpu_custom_call.1} parent=11 // pred_region
          _
        $region16: #{tpu_custom_call.1} parent=11 // pred_fallthru
          _
        // Predicated region
        $region17: #{tpu_custom_call.1} parent=11 // pred_check
          %p168 = pneg %p82
        $region18: #{tpu_custom_call.1} parent=11 // pred_check_branch
          %170 = sbr.rel (%p168) target = $region20
        $region19: #{tpu_custom_call.1} parent=11 // pred_region
          _
        $region20: #{tpu_custom_call.1} parent=11 // pred_fallthru
          _
        // Predicated region
        $region21: #{tpu_custom_call.1} parent=11 // pred_check
          %p171 = pneg %p103
        $region22: #{tpu_custom_call.1} parent=11 // pred_check_branch
          %173 = sbr.rel (%p171) target = $region24
        $region23: #{tpu_custom_call.1} parent=11 // pred_region
          _
        $region24: #{tpu_custom_call.1} parent=11 // pred_fallthru
          _
        // Predicated region
        $region25: #{tpu_custom_call.1} parent=11 // pred_check
          %p174 = pneg %p124
        $region26: #{tpu_custom_call.1} parent=11 // pred_check_branch
          %176 = sbr.rel (%p174) target = $region28
        $region27: #{tpu_custom_call.1} parent=11 // pred_region
          _
        $region28: #{tpu_custom_call.1} parent=11 // pred_fallthru
          _
      $region12: #{tpu_custom_call.1} parent=5 // pred_fallthru
        _
      %p177 = scmp.lt.s32.totalorder %s14, 2
      // Predicated region
      $region29: #{tpu_custom_call.1} parent=5 // pred_check
        %p178 = pneg %p177
      $region30: #{tpu_custom_call.1} parent=5 // pred_check_branch
        %180 = sbr.rel (%p178) target = $region32
      $region31: #{tpu_custom_call.1} parent=5 // pred_region
        // Predicated region
        $region33: #{tpu_custom_call.1} parent=31 // pred_check
          %p181 = pneg %p34
        $region34: #{tpu_custom_call.1} parent=31 // pred_check_branch
          %183 = sbr.rel (%p181) target = $region36
        $region35: #{tpu_custom_call.1} parent=31 // pred_region
          %p184 = scmp.lt.s32.totalorder %s14, 1
          %s185 = scalar_select %p184, %s14, 1
          %s186 = smul.addr %s185, 8
          %s187 = smul.addr %s186, 8
          %s188 = scalar_lea.vmem %s0, %s187
        $region36: #{tpu_custom_call.1} parent=31 // pred_fallthru
          _
      $region32: #{tpu_custom_call.1} parent=5 // pred_fallthru
        _
      %p189 = scmp.le.s32.totalorder 1, %s14
      %p190 = scmp.lt.s32.totalorder %s14, 3
      %p191 = pnand %p189, %p190
      %p192 = pneg %p191
      // Predicated region
      $region37: #{tpu_custom_call.1} parent=5 // pred_check
        _
      $region38: #{tpu_custom_call.1} parent=5 // pred_check_branch
        %194 = sbr.rel (%p191) target = $region40
      $region39: #{tpu_custom_call.1} parent=5 // pred_region
        %s195 = ssub.s32 %s14, 1
        %p196 = scmp.lt.s32.totalorder %s19, 1
        %s197 = scalar_select %p196, %s19, 1
        %s198 = smul.addr %s197, 8
        %s199 = smul.addr %s198, 8
        %s200 = scalar_lea.vmem %s0, %s199
        %p201 = pneg %p40
        %p202 = pneg %p37
        %p203 = pneg %p61
        %p204 = pneg %p58
        %p205 = pneg %p82
        %p206 = pneg %p79
        %p207 = pneg %p103
        %p208 = pneg %p100
        %p209 = pneg %p124
        %p210 = pneg %p121
        %p211 = pneg %p150
        %p212 = pneg %p147
        %s213 = sand.u32 %s137, 1
        %s214 = scalar_lea.sflag [#allocation3], %s213
        %s215 = sand.u32 %s137, 1
        %s216 = smul.addr %s215, 64
        %s217 = scalar_lea.vmem [#allocation2], %s216
        %p218 = scmp.lt.s32.totalorder %s19, 1
        %s219 = scalar_select %p218, %s19, 1
        %s220 = smul.addr %s219, 8
        %s221 = smul.addr %s220, 8
        %s222 = scalar_lea.vmem %s0, %s221
        %v223 = vld [vmem:[%s222] sm:$0xff]
        %v224 = vld [vmem:[%s222 + $0x8] sm:$0xff]
        %v225 = vld [vmem:[%s222 + $0x10] sm:$0xff]
        %v226 = vld [vmem:[%s222 + $0x18] sm:$0xff]
        %v227 = vld [vmem:[%s222 + $0x20] sm:$0xff]
        %v228 = vld [vmem:[%s222 + $0x28] sm:$0xff]
        %v229 = vld [vmem:[%s222 + $0x30] sm:$0xff]
        %v230 = vld [vmem:[%s222 + $0x38] sm:$0xff]
        %v231 = vld [vmem:[%s1] sm:$0xff]
        %v232 = vld [vmem:[%s1 + $0x8] sm:$0xff]
        %v233 = vld [vmem:[%s1 + $0x10] sm:$0xff]
        %v234 = vld [vmem:[%s1 + $0x18] sm:$0xff]
        %v235 = vld [vmem:[%s1 + $0x20] sm:$0xff]
        %v236 = vld [vmem:[%s1 + $0x28] sm:$0xff]
        %v237 = vld [vmem:[%s1 + $0x30] sm:$0xff]
        %v238 = vld [vmem:[%s1 + $0x38] sm:$0xff]
        %v239 = vld [vmem:[%s1 + $0x40] sm:$0xff]
        %v240 = vld [vmem:[%s1 + $0x48] sm:$0xff]
        %v241 = vld [vmem:[%s1 + $0x50] sm:$0xff]
        %v242 = vld [vmem:[%s1 + $0x58] sm:$0xff]
        %v243 = vld [vmem:[%s2] sm:$0xff]
        %v244 = vld [vmem:[%s2 + $0x8] sm:$0xff]
        %v245 = vld [vmem:[%s2 + $0x10] sm:$0xff]
        %v246 = vld [vmem:[%s2 + $0x18] sm:$0xff]
        %v247 = vld [vmem:[%s2 + $0x20] sm:$0xff]
        %v248 = vld [vmem:[%s2 + $0x28] sm:$0xff]
        %v249 = vld [vmem:[%s2 + $0x30] sm:$0xff]
        %v250 = vld [vmem:[%s2 + $0x38] sm:$0xff]
        %v251 = vld [vmem:[%s2 + $0x40] sm:$0xff]
        %v252 = vld [vmem:[%s2 + $0x48] sm:$0xff]
        %v253 = vld [vmem:[%s2 + $0x50] sm:$0xff]
        %v254 = vld [vmem:[%s2 + $0x58] sm:$0xff]
        %256 = vset.pattern.permute.xlu0 0
        %257 = vperm.xlu0 %256, %v243
        %v258 = vpop.permute.xlu0 %257
        %261 = vset.pattern.permute.xlu0 0
        %262 = vperm.xlu0 %261, %v244
        %v263 = vpop.permute.xlu0 %262
        %266 = vset.pattern.permute.xlu0 0
        %267 = vperm.xlu0 %266, %v245
        %v268 = vpop.permute.xlu0 %267
        %271 = vset.pattern.permute.xlu0 0
        %272 = vperm.xlu0 %271, %v246
        %v273 = vpop.permute.xlu0 %272
        %276 = vset.pattern.permute.xlu0 0
        %277 = vperm.xlu0 %276, %v247
        %v278 = vpop.permute.xlu0 %277
        %281 = vset.pattern.permute.xlu0 0
        %282 = vperm.xlu0 %281, %v248
        %v283 = vpop.permute.xlu0 %282
        %286 = vset.pattern.permute.xlu0 0
        %287 = vperm.xlu0 %286, %v249
        %v288 = vpop.permute.xlu0 %287
        %291 = vset.pattern.permute.xlu0 0
        %292 = vperm.xlu0 %291, %v250
        %v293 = vpop.permute.xlu0 %292
        %296 = vset.pattern.permute.xlu0 0
        %297 = vperm.xlu0 %296, %v251
        %v298 = vpop.permute.xlu0 %297
        %301 = vset.pattern.permute.xlu0 0
        %302 = vperm.xlu0 %301, %v252
        %v303 = vpop.permute.xlu0 %302
        %306 = vset.pattern.permute.xlu0 0
        %307 = vperm.xlu0 %306, %v253
        %v308 = vpop.permute.xlu0 %307
        %311 = vset.pattern.permute.xlu0 0
        %312 = vperm.xlu0 %311, %v254
        %v313 = vpop.permute.xlu0 %312
        %vm315 = vcmask 261120
        %v317 = vsel %vm315, %v231, 0
        %v320 = vsel %vm315, %v232, 0
        %v323 = vsel %vm315, %v233, 0
        %v326 = vsel %vm315, %v234, 0
        %v329 = vsel %vm315, %v235, 0
        %v332 = vsel %vm315, %v236, 0
        %v335 = vsel %vm315, %v237, 0
        %v338 = vsel %vm315, %v238, 0
        %v341 = vsel %vm315, %v239, 0
        %v344 = vsel %vm315, %v240, 0
        %v347 = vsel %vm315, %v241, 0
        %v350 = vsel %vm315, %v242, 0
        %352 = vmatprep.subr.mxu0 %v224
        %353 = vmatpush1.msra.mxu0 %v223
        %354 = vmatprep.subr.mxu0 %v226
        %355 = vmatpush1.msra.mxu0 %v225
        %356 = vmatprep.subr.mxu0 %v228
        %357 = vmatpush1.msra.mxu0 %v227
        %358 = vmatprep.subr.mxu0 %v230
        %359 = vmatpush1.msra.mxu0 %v229
        %360 = vmatprep.subr.mxu0 0.0
        %361 = vmatpush1.msra.mxu0 0.0
        %362 = vmatprep.subr.mxu0 0.0
        %363 = vmatpush1.msra.mxu0 0.0
        %364 = vmatprep.subr.mxu0 0.0
        %365 = vmatpush1.msra.mxu0 0.0
        %366 = vmatprep.subr.mxu0 0.0
        %367 = vmatpush1.msra.mxu0 0.0
        %368 = vmatprep.subr.mxu0 0.0
        %369 = vmatpush1.msra.mxu0 0.0
        %370 = vmatprep.subr.mxu0 0.0
        %371 = vmatpush1.msra.mxu0 0.0
        %372 = vmatprep.subr.mxu0 0.0
        %373 = vmatpush1.msra.mxu0 0.0
        %374 = vmatprep.subr.mxu0 0.0
        %375 = vmatpush1.msra.mxu0 0.0
        %376 = vmatprep.subr.mxu0 0.0
        %377 = vmatpush1.msra.mxu0 0.0
        %378 = vmatprep.subr.mxu0 0.0
        %379 = vmatpush1.msra.mxu0 0.0
        %380 = vmatprep.subr.mxu0 0.0
        %381 = vmatpush1.msra.mxu0 0.0
        %382 = vmatprep.subr.mxu0 0.0
        %383 = vmatpush1.msra.mxu0 0.0
        %384 = vmatprep.subr.mxu0 0.0
        %385 = vmatpush1.msra.mxu0 0.0
        %386 = vmatprep.subr.mxu0 0.0
        %387 = vmatpush1.msra.mxu0 0.0
        %388 = vmatprep.subr.mxu0 0.0
        %389 = vmatpush1.msra.mxu0 0.0
        %390 = vmatprep.subr.mxu0 0.0
        %391 = vmatpush1.msra.mxu0 0.0
        %392 = vmatprep.subr.mxu0 0.0
        %393 = vmatpush1.msra.mxu0 0.0
        %394 = vmatprep.subr.mxu0 0.0
        %395 = vmatpush1.msra.mxu0 0.0
        %396 = vmatprep.subr.mxu0 0.0
        %397 = vmatpush1.msra.mxu0 0.0
        %398 = vmatprep.subr.mxu0 0.0
        %399 = vmatpush1.msra.mxu0 0.0
        %400 = vmatprep.subr.mxu0 0.0
        %401 = vmatpush1.msra.mxu0 0.0
        %402 = vmatprep.subr.mxu0 0.0
        %403 = vmatpush1.msra.mxu0 0.0
        %404 = vmatprep.subr.mxu0 0.0
        %405 = vmatpush1.msra.mxu0 0.0
        %406 = vmatprep.subr.mxu0 0.0
        %407 = vmatpush1.msra.mxu0 0.0
        %408 = vmatprep.subr.mxu0 0.0
        %409 = vmatpush1.msra.mxu0 0.0
        %410 = vmatprep.subr.mxu0 0.0
        %411 = vmatpush1.msra.mxu0 0.0
        %412 = vmatprep.subr.mxu0 0.0
        %413 = vmatpush1.msra.mxu0 0.0
        %414 = vmatprep.subr.mxu0 0.0
        %415 = vmatpush1.msra.mxu0 0.0
        %416 = vmatprep.mubr.f32.mxu0 0.0
        %417 = vmatmul.mubr.f32.gmra.mrb[0].mxu0 %v317
        %v418 = vpop.f32.mrb[0].mxu0
        %v419 = vadd.f32 %v258, %v418
        %v420 = vpop.f32.mrb[0].mxu0
        %v421 = vadd.f32 %v258, %v420
        %422 = vmatprep.mubr.f32.mxu0 0.0
        %423 = vmatmul.mubr.f32.gmra.mrb[0].mxu0 %v320
        %v424 = vpop.f32.mrb[0].mxu0
        %v425 = vadd.f32 %v263, %v424
        %v426 = vpop.f32.mrb[0].mxu0
        %v427 = vadd.f32 %v263, %v426
        %428 = vmatprep.mubr.f32.mxu0 0.0
        %429 = vmatmul.mubr.f32.gmra.mrb[0].mxu0 %v323
        %v430 = vpop.f32.mrb[0].mxu0
        %v431 = vadd.f32 %v268, %v430
        %v432 = vpop.f32.mrb[0].mxu0
        %v433 = vadd.f32 %v268, %v432
        %434 = vmatprep.mubr.f32.mxu0 0.0
        %435 = vmatmul.mubr.f32.gmra.mrb[0].mxu0 %v326
        %v436 = vpop.f32.mrb[0].mxu0
        %v437 = vadd.f32 %v273, %v436
        %v438 = vpop.f32.mrb[0].mxu0
        %v439 = vadd.f32 %v273, %v438
        %440 = vmatprep.mubr.f32.mxu0 0.0
        %441 = vmatmul.mubr.f32.gmra.mrb[0].mxu0 %v329
        %v442 = vpop.f32.mrb[0].mxu0
        %v443 = vadd.f32 %v278, %v442
        %v444 = vpop.f32.mrb[0].mxu0
        %v445 = vadd.f32 %v278, %v444
        %446 = vmatprep.mubr.f32.mxu0 0.0
        %447 = vmatmul.mubr.f32.gmra.mrb[0].mxu0 %v332
        %v448 = vpop.f32.mrb[0].mxu0
        %v449 = vadd.f32 %v283, %v448
        %v450 = vpop.f32.mrb[0].mxu0
        %v451 = vadd.f32 %v283, %v450
        %452 = vmatprep.mubr.f32.mxu0 0.0
        %453 = vmatmul.mubr.f32.gmra.mrb[0].mxu0 %v335
        %v454 = vpop.f32.mrb[0].mxu0
        %v455 = vadd.f32 %v288, %v454
        %v456 = vpop.f32.mrb[0].mxu0
        %v457 = vadd.f32 %v288, %v456
        %458 = vmatprep.mubr.f32.mxu0 0.0
        %459 = vmatmul.mubr.f32.gmra.mrb[0].mxu0 %v338
        %v460 = vpop.f32.mrb[0].mxu0
        %v461 = vadd.f32 %v293, %v460
        %v462 = vpop.f32.mrb[0].mxu0
        %v463 = vadd.f32 %v293, %v462
        %464 = vmatprep.mubr.f32.mxu0 0.0
        %465 = vmatmul.mubr.f32.gmra.mrb[0].mxu0 %v341
        %v466 = vpop.f32.mrb[0].mxu0
        %v467 = vadd.f32 %v298, %v466
        %v468 = vpop.f32.mrb[0].mxu0
        %v469 = vadd.f32 %v298, %v468
        %470 = vmatprep.mubr.f32.mxu0 0.0
        %471 = vmatmul.mubr.f32.gmra.mrb[0].mxu0 %v344
        %v472 = vpop.f32.mrb[0].mxu0
        %v473 = vadd.f32 %v303, %v472
        %v474 = vpop.f32.mrb[0].mxu0
        %v475 = vadd.f32 %v303, %v474
        %476 = vmatprep.mubr.f32.mxu0 0.0
        %477 = vmatmul.mubr.f32.gmra.mrb[0].mxu0 %v347
        %v478 = vpop.f32.mrb[0].mxu0
        %v479 = vadd.f32 %v308, %v478
        %v480 = vpop.f32.mrb[0].mxu0
        %v481 = vadd.f32 %v308, %v480
        %482 = vmatprep.mubr.f32.mxu0 0.0
        %483 = vmatmul.mubr.f32.gmra.mrb[0].mxu0 %v350
        %v484 = vpop.f32.mrb[0].mxu0
        %v485 = vadd.f32 %v313, %v484
        %v486 = vpop.f32.mrb[0].mxu0
        %v487 = vadd.f32 %v313, %v486
        %488 = vdwg.mxu0
        %v489 = vld [vmem:[%s3] sm:$0xff]
        %v490 = vld [vmem:[%s3 + $0x8] sm:$0xff]
        %v491 = vld [vmem:[%s3 + $0x10] sm:$0xff]
        %v492 = vld [vmem:[%s3 + $0x18] sm:$0xff]
        %v493 = vld [vmem:[%s4] sm:$0xff]
        %v494 = vld [vmem:[%s4 + $0x8] sm:$0xff]
        %v495 = vld [vmem:[%s4 + $0x10] sm:$0xff]
        %v496 = vld [vmem:[%s4 + $0x18] sm:$0xff]
        %v497 = vmax.f32 %v419, %v421
        %498 = vmax.xlane.f32.xlu0 %v497
        %v499 = vpop.xlane.xlu0 %498
        %v500 = vmax.f32 %v425, %v427
        %501 = vmax.xlane.f32.xlu0 %v500
        %v502 = vpop.xlane.xlu0 %501
        %v503 = vmax.f32 %v431, %v433
        %504 = vmax.xlane.f32.xlu0 %v503
        %v505 = vpop.xlane.xlu0 %504
        %v506 = vmax.f32 %v437, %v439
        %507 = vmax.xlane.f32.xlu0 %v506
        %v508 = vpop.xlane.xlu0 %507
        %v509 = vsub.f32 %v419, %v499
        %v510 = vsub.f32 %v421, %v499
        %v511 = vsub.f32 %v425, %v502
        %v512 = vsub.f32 %v427, %v502
        %v513 = vsub.f32 %v431, %v505
        %v514 = vsub.f32 %v433, %v505
        %v515 = vsub.f32 %v437, %v508
        %v516 = vsub.f32 %v439, %v508
        %v517 = vmul.f32 %v509, 1.442695
        %v518 = vpow.pop %v517
        %v519 = vmul.f32 %v510, 1.442695
        %v520 = vpow.pop %v519
        %v521 = vmul.f32 %v511, 1.442695
        %v522 = vpow.pop %v521
        %v523 = vmul.f32 %v512, 1.442695
        %v524 = vpow.pop %v523
        %v525 = vmul.f32 %v513, 1.442695
        %v526 = vpow.pop %v525
        %v527 = vmul.f32 %v514, 1.442695
        %v528 = vpow.pop %v527
        %v529 = vmul.f32 %v515, 1.442695
        %v530 = vpow.pop %v529
        %v531 = vmul.f32 %v516, 1.442695
        %v532 = vpow.pop %v531
        %v533 = vadd.f32 %v518, %v520
        %534 = vadd.xlane.f32.xlu0 %v533
        %v535 = vpop.xlane.xlu0 %534
        %v536 = vadd.f32 %v522, %v524
        %537 = vadd.xlane.f32.xlu0 %v536
        %v538 = vpop.xlane.xlu0 %537
        %v539 = vadd.f32 %v526, %v528
        %540 = vadd.xlane.f32.xlu0 %v539
        %v541 = vpop.xlane.xlu0 %540
        %v542 = vadd.f32 %v530, %v532
        %543 = vadd.xlane.f32.xlu0 %v542
        %v544 = vpop.xlane.xlu0 %543
        %v545 = vrcp.pop %v535
        %v546 = vrcp.pop %v538
        %v547 = vrcp.pop %v541
        %v548 = vrcp.pop %v544
        %v549 = vmul.f32 %v535, %v545
        %v550 = vmul.f32 %v538, %v546
        %v551 = vmul.f32 %v541, %v547
        %v552 = vmul.f32 %v544, %v548
        %v553 = vsub.f32 2.0, %v549
        %v554 = vsub.f32 2.0, %v550
        %v555 = vsub.f32 2.0, %v551
        %v556 = vsub.f32 2.0, %v552
        %v557 = vmul.f32 %v545, %v553
        %v558 = vmul.f32 %v546, %v554
        %v559 = vmul.f32 %v547, %v555
        %v560 = vmul.f32 %v548, %v556
        %v561 = vmul.f32 %v518, %v557
        %v562 = vmul.f32 %v520, %v557
        %v563 = vmul.f32 %v522, %v558
        %v564 = vmul.f32 %v524, %v558
        %v565 = vmul.f32 %v526, %v559
        %v566 = vmul.f32 %v528, %v559
        %v567 = vmul.f32 %v530, %v560
        %v568 = vmul.f32 %v532, %v560
        %v569 = vmax.f32 %v443, %v449
        %v570 = vrot.slane %v569, 4
        %v571 = vmax.f32 %v569, %v570
        %v572 = vrot.slane %v571, 2
        %v573 = vmax.f32 %v571, %v572
        %v574 = vrot.slane %v573, 1
        %v575 = vmax.f32 %v573, %v574
        %v576 = vmax.f32 %v445, %v451
        %v577 = vrot.slane %v576, 4
        %v578 = vmax.f32 %v576, %v577
        %v579 = vrot.slane %v578, 2
        %v580 = vmax.f32 %v578, %v579
        %v581 = vrot.slane %v580, 1
        %v582 = vmax.f32 %v580, %v581
        %v583 = vmax.f32 %v455, %v461
        %v584 = vrot.slane %v583, 4
        %v585 = vmax.f32 %v583, %v584
        %v586 = vrot.slane %v585, 2
        %v587 = vmax.f32 %v585, %v586
        %v588 = vrot.slane %v587, 1
        %v589 = vmax.f32 %v587, %v588
        %v590 = vmax.f32 %v457, %v463
        %v591 = vrot.slane %v590, 4
        %v592 = vmax.f32 %v590, %v591
        %v593 = vrot.slane %v592, 2
        %v594 = vmax.f32 %v592, %v593
        %v595 = vrot.slane %v594, 1
        %v596 = vmax.f32 %v594, %v595
        %v597 = vsub.f32 %v443, %v575
        %v598 = vsub.f32 %v445, %v582
        %v599 = vsub.f32 %v449, %v575
        %v600 = vsub.f32 %v451, %v582
        %v601 = vsub.f32 %v455, %v589
        %v602 = vsub.f32 %v457, %v596
        %v603 = vsub.f32 %v461, %v589
        %v604 = vsub.f32 %v463, %v596
        %v605 = vmul.f32 %v597, 1.442695
        %v606 = vpow.pop %v605
        %v607 = vmul.f32 %v598, 1.442695
        %v608 = vpow.pop %v607
        %v609 = vmul.f32 %v599, 1.442695
        %v610 = vpow.pop %v609
        %v611 = vmul.f32 %v600, 1.442695
        %v612 = vpow.pop %v611
        %v613 = vmul.f32 %v601, 1.442695
        %v614 = vpow.pop %v613
        %v615 = vmul.f32 %v602, 1.442695
        %v616 = vpow.pop %v615
        %v617 = vmul.f32 %v603, 1.442695
        %v618 = vpow.pop %v617
        %v619 = vmul.f32 %v604, 1.442695
        %v620 = vpow.pop %v619
        %v621 = vadd.f32 %v606, %v610
        %v622 = vrot.slane %v621, 4
        %v623 = vadd.f32 %v621, %v622
        %v624 = vrot.slane %v623, 2
        %v625 = vadd.f32 %v623, %v624
        %v626 = vrot.slane %v625, 1
        %v627 = vadd.f32 %v625, %v626
        %v628 = vadd.f32 %v608, %v612
        %v629 = vrot.slane %v628, 4
        %v630 = vadd.f32 %v628, %v629
        %v631 = vrot.slane %v630, 2
        %v632 = vadd.f32 %v630, %v631
        %v633 = vrot.slane %v632, 1
        %v634 = vadd.f32 %v632, %v633
        %v635 = vadd.f32 %v614, %v618
        %v636 = vrot.slane %v635, 4
        %v637 = vadd.f32 %v635, %v636
        %v638 = vrot.slane %v637, 2
        %v639 = vadd.f32 %v637, %v638
        %v640 = vrot.slane %v639, 1
        %v641 = vadd.f32 %v639, %v640
        %v642 = vadd.f32 %v616, %v620
        %v643 = vrot.slane %v642, 4
        %v644 = vadd.f32 %v642, %v643
        %v645 = vrot.slane %v644, 2
        %v646 = vadd.f32 %v644, %v645
        %v647 = vrot.slane %v646, 1
        %v648 = vadd.f32 %v646, %v647
        %v649 = vrcp.pop %v627
        %v650 = vrcp.pop %v634
        %v651 = vrcp.pop %v641
        %v652 = vrcp.pop %v648
        %v653 = vmul.f32 %v627, %v649
        %v654 = vmul.f32 %v634, %v650
        %v655 = vmul.f32 %v641, %v651
        %v656 = vmul.f32 %v648, %v652
        %v657 = vsub.f32 2.0, %v653
        %v658 = vsub.f32 2.0, %v654
        %v659 = vsub.f32 2.0, %v655
        %v660 = vsub.f32 2.0, %v656
        %v661 = vmul.f32 %v649, %v657
        %v662 = vmul.f32 %v650, %v658
        %v663 = vmul.f32 %v651, %v659
        %v664 = vmul.f32 %v652, %v660
        %v665 = vmul.f32 %v606, %v661
        %v666 = vmul.f32 %v608, %v662
        %v667 = vmul.f32 %v610, %v661
        %v668 = vmul.f32 %v612, %v662
        %v669 = vmul.f32 %v614, %v663
        %v670 = vmul.f32 %v616, %v664
        %v671 = vmul.f32 %v618, %v663
        %v672 = vmul.f32 %v620, %v664
        %673 = vmatprep.subr.mxu0 %v469
        %674 = vmatpush1.xpose.msra.mxu0 %v467
        %675 = vmatprep.subr.mxu0 %v475
        %676 = vmatpush1.xpose.msra.mxu0 %v473
        %677 = vmatprep.subr.mxu0 0.0
        %678 = vmatpush1.xpose.msra.mxu0 0.0
        %679 = vmatprep.subr.mxu0 0.0
        %680 = vmatpush1.xpose.msra.mxu0 0.0
        %681 = vmatprep.subr.mxu0 0.0
        %682 = vmatpush1.xpose.msra.mxu0 0.0
        %683 = vmatprep.subr.mxu0 0.0
        %684 = vmatpush1.xpose.msra.mxu0 0.0
        %685 = vmatprep.subr.mxu0 0.0
        %686 = vmatpush1.xpose.msra.mxu0 0.0
        %687 = vmatprep.subr.mxu0 0.0
        %688 = vmatpush1.xpose.msra.mxu0 0.0
        %689 = vmatprep.subr.mxu0 0.0
        %690 = vmatpush1.xpose.msra.mxu0 0.0
        %691 = vmatprep.subr.mxu0 0.0
        %692 = vmatpush1.xpose.msra.mxu0 0.0
        %693 = vmatprep.subr.mxu0 0.0
        %694 = vmatpush1.xpose.msra.mxu0 0.0
        %695 = vmatprep.subr.mxu0 0.0
        %696 = vmatpush1.xpose.msra.mxu0 0.0
        %697 = vmatprep.subr.mxu0 0.0
        %698 = vmatpush1.xpose.msra.mxu0 0.0
        %699 = vmatprep.subr.mxu0 0.0
        %700 = vmatpush1.xpose.msra.mxu0 0.0
        %701 = vmatprep.subr.mxu0 0.0
        %702 = vmatpush1.xpose.msra.mxu0 0.0
        %703 = vmatprep.subr.mxu0 0.0
        %704 = vmatpush1.xpose.msra.mxu0 0.0
        %705 = vmatprep.subr.mxu0 0.0
        %706 = vmatpush1.xpose.msra.mxu0 0.0
        %707 = vmatprep.subr.mxu0 0.0
        %708 = vmatpush1.xpose.msra.mxu0 0.0
        %709 = vmatprep.subr.mxu0 0.0
        %710 = vmatpush1.xpose.msra.mxu0 0.0
        %711 = vmatprep.subr.mxu0 0.0
        %712 = vmatpush1.xpose.msra.mxu0 0.0
        %713 = vmatprep.subr.mxu0 0.0
        %714 = vmatpush1.xpose.msra.mxu0 0.0
        %715 = vmatprep.subr.mxu0 0.0
        %716 = vmatpush1.xpose.msra.mxu0 0.0
        %717 = vmatprep.subr.mxu0 0.0
        %718 = vmatpush1.xpose.msra.mxu0 0.0
        %719 = vmatprep.subr.mxu0 0.0
        %720 = vmatpush1.xpose.msra.mxu0 0.0
        %721 = vmatprep.subr.mxu0 0.0
        %722 = vmatpush1.xpose.msra.mxu0 0.0
        %723 = vmatprep.subr.mxu0 0.0
        %724 = vmatpush1.xpose.msra.mxu0 0.0
        %725 = vmatprep.subr.mxu0 0.0
        %726 = vmatpush1.xpose.msra.mxu0 0.0
        %727 = vmatprep.subr.mxu0 0.0
        %728 = vmatpush1.xpose.msra.mxu0 0.0
        %729 = vmatprep.subr.mxu0 0.0
        %730 = vmatpush1.xpose.msra.mxu0 0.0
        %731 = vmatprep.subr.mxu0 0.0
        %732 = vmatpush1.xpose.msra.mxu0 0.0
        %733 = vmatprep.subr.mxu0 0.0
        %734 = vmatpush1.xpose.msra.mxu0 0.0
        %735 = vmatprep.subr.mxu0 0.0
        %736 = vmatpush1.xpose.msra.mxu0 0.0
        %737 = vmatprep.mubr.f32.mxu0 %v562
        %738 = vmatmul.mubr.f32.gmra.mrb[0].mxu0 %v561
        %v739 = vpop.f32.mrb[0].mxu0
        %v740 = vadd.f32 0.0, %v739
        %v741 = vpop.f32.mrb[0].mxu0
        %742 = vmatprep.mubr.f32.mxu0 %v564
        %743 = vmatmul.mubr.f32.gmra.mrb[0].mxu0 %v563
        %v744 = vpop.f32.mrb[0].mxu0
        %v745 = vadd.f32 0.0, %v744
        %v746 = vpop.f32.mrb[0].mxu0
        %747 = vdwg.mxu0
        %748 = vmatprep.subr.mxu0 %v481
        %749 = vmatpush1.xpose.msra.mxu0 %v479
        %750 = vmatprep.subr.mxu0 %v487
        %751 = vmatpush1.xpose.msra.mxu0 %v485
        %752 = vmatprep.subr.mxu0 0.0
        %753 = vmatpush1.xpose.msra.mxu0 0.0
        %754 = vmatprep.subr.mxu0 0.0
        %755 = vmatpush1.xpose.msra.mxu0 0.0
        %756 = vmatprep.subr.mxu0 0.0
        %757 = vmatpush1.xpose.msra.mxu0 0.0
        %758 = vmatprep.subr.mxu0 0.0
        %759 = vmatpush1.xpose.msra.mxu0 0.0
        %760 = vmatprep.subr.mxu0 0.0
        %761 = vmatpush1.xpose.msra.mxu0 0.0
        %762 = vmatprep.subr.mxu0 0.0
        %763 = vmatpush1.xpose.msra.mxu0 0.0
        %764 = vmatprep.subr.mxu0 0.0
        %765 = vmatpush1.xpose.msra.mxu0 0.0
        %766 = vmatprep.subr.mxu0 0.0
        %767 = vmatpush1.xpose.msra.mxu0 0.0
        %768 = vmatprep.subr.mxu0 0.0
        %769 = vmatpush1.xpose.msra.mxu0 0.0
        %770 = vmatprep.subr.mxu0 0.0
        %771 = vmatpush1.xpose.msra.mxu0 0.0
        %772 = vmatprep.subr.mxu0 0.0
        %773 = vmatpush1.xpose.msra.mxu0 0.0
        %774 = vmatprep.subr.mxu0 0.0
        %775 = vmatpush1.xpose.msra.mxu0 0.0
        %776 = vmatprep.subr.mxu0 0.0
        %777 = vmatpush1.xpose.msra.mxu0 0.0
        %778 = vmatprep.subr.mxu0 0.0
        %779 = vmatpush1.xpose.msra.mxu0 0.0
        %780 = vmatprep.subr.mxu0 0.0
        %781 = vmatpush1.xpose.msra.mxu0 0.0
        %782 = vmatprep.subr.mxu0 0.0
        %783 = vmatpush1.xpose.msra.mxu0 0.0
        %784 = vmatprep.subr.mxu0 0.0
        %785 = vmatpush1.xpose.msra.mxu0 0.0
        %786 = vmatprep.subr.mxu0 0.0
        %787 = vmatpush1.xpose.msra.mxu0 0.0
        %788 = vmatprep.subr.mxu0 0.0
        %789 = vmatpush1.xpose.msra.mxu0 0.0
        %790 = vmatprep.subr.mxu0 0.0
        %791 = vmatpush1.xpose.msra.mxu0 0.0
        %792 = vmatprep.subr.mxu0 0.0
        %793 = vmatpush1.xpose.msra.mxu0 0.0
        %794 = vmatprep.subr.mxu0 0.0
        %795 = vmatpush1.xpose.msra.mxu0 0.0
        %796 = vmatprep.subr.mxu0 0.0
        %797 = vmatpush1.xpose.msra.mxu0 0.0
        %798 = vmatprep.subr.mxu0 0.0
        %799 = vmatpush1.xpose.msra.mxu0 0.0
        %800 = vmatprep.subr.mxu0 0.0
        %801 = vmatpush1.xpose.msra.mxu0 0.0
        %802 = vmatprep.subr.mxu0 0.0
        %803 = vmatpush1.xpose.msra.mxu0 0.0
        %804 = vmatprep.subr.mxu0 0.0
        %805 = vmatpush1.xpose.msra.mxu0 0.0
        %806 = vmatprep.subr.mxu0 0.0
        %807 = vmatpush1.xpose.msra.mxu0 0.0
        %808 = vmatprep.subr.mxu0 0.0
        %809 = vmatpush1.xpose.msra.mxu0 0.0
        %810 = vmatprep.subr.mxu0 0.0
        %811 = vmatpush1.xpose.msra.mxu0 0.0
        %812 = vmatprep.mubr.f32.mxu0 %v566
        %813 = vmatmul.mubr.f32.gmra.mrb[0].mxu0 %v565
        %v814 = vpop.f32.mrb[0].mxu0
        %v815 = vadd.f32 0.0, %v814
        %v816 = vpop.f32.mrb[0].mxu0
        %817 = vmatprep.mubr.f32.mxu0 %v568
        %818 = vmatmul.mubr.f32.gmra.mrb[0].mxu0 %v567
        %v819 = vpop.f32.mrb[0].mxu0
        %v820 = vadd.f32 0.0, %v819
        %v821 = vpop.f32.mrb[0].mxu0
        %822 = vdwg.mxu0
        %vm823 = vcmask 130048
        %v825 = vsel %vm823, %v740, 0
        %v828 = vsel %vm823, %v745, 0
        %830 = vmatprep.subr.mxu0 0.0
        %831 = vmatpush1.msra.mxu0 %v489
        %832 = vmatprep.subr.mxu0 0.0
        %833 = vmatpush1.msra.mxu0 %v490
        %834 = vmatprep.subr.mxu0 0.0
        %835 = vmatpush1.msra.mxu0 0.0
        %836 = vmatprep.subr.mxu0 0.0
        %837 = vmatpush1.msra.mxu0 0.0
        %838 = vmatprep.subr.mxu0 0.0
        %839 = vmatpush1.msra.mxu0 0.0
        %840 = vmatprep.subr.mxu0 0.0
        %841 = vmatpush1.msra.mxu0 0.0
        %842 = vmatprep.subr.mxu0 0.0
        %843 = vmatpush1.msra.mxu0 0.0
        %844 = vmatprep.subr.mxu0 0.0
        %845 = vmatpush1.msra.mxu0 0.0
        %846 = vmatprep.subr.mxu0 0.0
        %847 = vmatpush1.msra.mxu0 0.0
        %848 = vmatprep.subr.mxu0 0.0
        %849 = vmatpush1.msra.mxu0 0.0
        %850 = vmatprep.subr.mxu0 0.0
        %851 = vmatpush1.msra.mxu0 0.0
        %852 = vmatprep.subr.mxu0 0.0
        %853 = vmatpush1.msra.mxu0 0.0
        %854 = vmatprep.subr.mxu0 0.0
        %855 = vmatpush1.msra.mxu0 0.0
        %856 = vmatprep.subr.mxu0 0.0
        %857 = vmatpush1.msra.mxu0 0.0
        %858 = vmatprep.subr.mxu0 0.0
        %859 = vmatpush1.msra.mxu0 0.0
        %860 = vmatprep.subr.mxu0 0.0
        %861 = vmatpush1.msra.mxu0 0.0
        %862 = vmatprep.subr.mxu0 0.0
        %863 = vmatpush1.msra.mxu0 0.0
        %864 = vmatprep.subr.mxu0 0.0
        %865 = vmatpush1.msra.mxu0 0.0
        %866 = vmatprep.subr.mxu0 0.0
        %867 = vmatpush1.msra.mxu0 0.0
        %868 = vmatprep.subr.mxu0 0.0
        %869 = vmatpush1.msra.mxu0 0.0
        %870 = vmatprep.subr.mxu0 0.0
        %871 = vmatpush1.msra.mxu0 0.0
        %872 = vmatprep.subr.mxu0 0.0
        %873 = vmatpush1.msra.mxu0 0.0
        %874 = vmatprep.subr.mxu0 0.0
        %875 = vmatpush1.msra.mxu0 0.0
        %876 = vmatprep.subr.mxu0 0.0
        %877 = vmatpush1.msra.mxu0 0.0
        %878 = vmatprep.subr.mxu0 0.0
        %879 = vmatpush1.msra.mxu0 0.0
        %880 = vmatprep.subr.mxu0 0.0
        %881 = vmatpush1.msra.mxu0 0.0
        %882 = vmatprep.subr.mxu0 0.0
        %883 = vmatpush1.msra.mxu0 0.0
        %884 = vmatprep.subr.mxu0 0.0
        %885 = vmatpush1.msra.mxu0 0.0
        %886 = vmatprep.subr.mxu0 0.0
        %887 = vmatpush1.msra.mxu0 0.0
        %888 = vmatprep.subr.mxu0 0.0
        %889 = vmatpush1.msra.mxu0 0.0
        %890 = vmatprep.subr.mxu0 0.0
        %891 = vmatpush1.msra.mxu0 0.0
        %892 = vmatprep.subr.mxu0 0.0
        %893 = vmatpush1.msra.mxu0 0.0
        %894 = vmatprep.mubr.f32.mxu0 0.0
        %895 = vmatmul.mubr.f32.gmra.mrb[0].mxu0 %v825
        %v896 = vpop.f32.mrb[0].mxu0
        %v897 = vadd.f32 0.0, %v896
        %v898 = vpop.f32.mrb[0].mxu0
        %899 = vmatprep.mubr.f32.mxu0 0.0
        %900 = vmatmul.mubr.f32.gmra.mrb[0].mxu0 %v828
        %v901 = vpop.f32.mrb[0].mxu0
        %v902 = vadd.f32 0.0, %v901
        %v903 = vpop.f32.mrb[0].mxu0
        %904 = vdwg.mxu0
        %v906 = vsel %vm823, %v815, 0
        %v909 = vsel %vm823, %v820, 0
        %911 = vmatprep.subr.mxu0 0.0
        %912 = vmatpush1.msra.mxu0 %v491
        %913 = vmatprep.subr.mxu0 0.0
        %914 = vmatpush1.msra.mxu0 %v492
        %915 = vmatprep.subr.mxu0 0.0
        %916 = vmatpush1.msra.mxu0 0.0
        %917 = vmatprep.subr.mxu0 0.0
        %918 = vmatpush1.msra.mxu0 0.0
        %919 = vmatprep.subr.mxu0 0.0
        %920 = vmatpush1.msra.mxu0 0.0
        %921 = vmatprep.subr.mxu0 0.0
        %922 = vmatpush1.msra.mxu0 0.0
        %923 = vmatprep.subr.mxu0 0.0
        %924 = vmatpush1.msra.mxu0 0.0
        %925 = vmatprep.subr.mxu0 0.0
        %926 = vmatpush1.msra.mxu0 0.0
        %927 = vmatprep.subr.mxu0 0.0
        %928 = vmatpush1.msra.mxu0 0.0
        %929 = vmatprep.subr.mxu0 0.0
        %930 = vmatpush1.msra.mxu0 0.0
        %931 = vmatprep.subr.mxu0 0.0
        %932 = vmatpush1.msra.mxu0 0.0
        %933 = vmatprep.subr.mxu0 0.0
        %934 = vmatpush1.msra.mxu0 0.0
        %935 = vmatprep.subr.mxu0 0.0
        %936 = vmatpush1.msra.mxu0 0.0
        %937 = vmatprep.subr.mxu0 0.0
        %938 = vmatpush1.msra.mxu0 0.0
        %939 = vmatprep.subr.mxu0 0.0
        %940 = vmatpush1.msra.mxu0 0.0
        %941 = vmatprep.subr.mxu0 0.0
        %942 = vmatpush1.msra.mxu0 0.0
        %943 = vmatprep.subr.mxu0 0.0
        %944 = vmatpush1.msra.mxu0 0.0
        %945 = vmatprep.subr.mxu0 0.0
        %946 = vmatpush1.msra.mxu0 0.0
        %947 = vmatprep.subr.mxu0 0.0
        %948 = vmatpush1.msra.mxu0 0.0
        %949 = vmatprep.subr.mxu0 0.0
        %950 = vmatpush1.msra.mxu0 0.0
        %951 = vmatprep.subr.mxu0 0.0
        %952 = vmatpush1.msra.mxu0 0.0
        %953 = vmatprep.subr.mxu0 0.0
        %954 = vmatpush1.msra.mxu0 0.0
        %955 = vmatprep.subr.mxu0 0.0
        %956 = vmatpush1.msra.mxu0 0.0
        %957 = vmatprep.subr.mxu0 0.0
        %958 = vmatpush1.msra.mxu0 0.0
        %959 = vmatprep.subr.mxu0 0.0
        %960 = vmatpush1.msra.mxu0 0.0
        %961 = vmatprep.subr.mxu0 0.0
        %962 = vmatpush1.msra.mxu0 0.0
        %963 = vmatprep.subr.mxu0 0.0
        %964 = vmatpush1.msra.mxu0 0.0
        %965 = vmatprep.subr.mxu0 0.0
        %966 = vmatpush1.msra.mxu0 0.0
        %967 = vmatprep.subr.mxu0 0.0
        %968 = vmatpush1.msra.mxu0 0.0
        %969 = vmatprep.subr.mxu0 0.0
        %970 = vmatpush1.msra.mxu0 0.0
        %971 = vmatprep.subr.mxu0 0.0
        %972 = vmatpush1.msra.mxu0 0.0
        %973 = vmatprep.subr.mxu0 0.0
        %974 = vmatpush1.msra.mxu0 0.0
        %975 = vmatprep.mubr.f32.mxu0 0.0
        %976 = vmatmul.mubr.f32.gmra.mrb[0].mxu0 %v906
        %v977 = vpop.f32.mrb[0].mxu0
        %v978 = vadd.f32 0.0, %v977
        %v979 = vpop.f32.mrb[0].mxu0
        %980 = vmatprep.mubr.f32.mxu0 0.0
        %981 = vmatmul.mubr.f32.gmra.mrb[0].mxu0 %v909
        %v982 = vpop.f32.mrb[0].mxu0
        %v983 = vadd.f32 0.0, %v982
        %v984 = vpop.f32.mrb[0].mxu0
        %985 = vdwg.mxu0
        %986 = vxpose.xlu0.b32.start [1/16] %v897, 128
        %987 = vxpose.xlu0.b32.cont [2/16] %v902, 128
        %988 = vxpose.xlu0.b32.cont [3/16] %v978, 128
        %989 = vxpose.xlu0.b32.cont [4/16] %v983, 128
        %990 = vxpose.xlu0.b32.cont [5/16] 0.0, 128
        %991 = vxpose.xlu0.b32.cont [6/16] 0.0, 128
        %992 = vxpose.xlu0.b32.cont [7/16] 0.0, 128
        %993 = vxpose.xlu0.b32.cont [8/16] 0.0, 128
        %994 = vxpose.xlu0.b32.cont [9/16] 0.0, 128
        %995 = vxpose.xlu0.b32.cont [10/16] 0.0, 128
        %996 = vxpose.xlu0.b32.cont [11/16] 0.0, 128
        %997 = vxpose.xlu0.b32.cont [12/16] 0.0, 128
        %998 = vxpose.xlu0.b32.cont [13/16] 0.0, 128
        %999 = vxpose.xlu0.b32.cont [14/16] 0.0, 128
        %1000 = vxpose.xlu0.b32.cont [15/16] 0.0, 128
        %1001 = vxpose.xlu0.b32.end [16/16] 0.0, 128
        %v1002 = vpop.trf.xlu0
        %v1003 = vpop.trf.xlu0
        %v1004 = vpop.trf.xlu0
        %v1005 = vpop.trf.xlu0
        %v1006 = vpop.trf.xlu0
        %v1007 = vpop.trf.xlu0
        %v1008 = vpop.trf.xlu0
        %v1009 = vpop.trf.xlu0
        %v1010 = vpop.trf.xlu0
        %v1011 = vpop.trf.xlu0
        %v1012 = vpop.trf.xlu0
        %v1013 = vpop.trf.xlu0
        %v1014 = vpop.trf.xlu0
        %v1015 = vpop.trf.xlu0
        %v1016 = vpop.trf.xlu0
        %v1017 = vpop.trf.xlu0
        %v1019 = vsel %vm315, %v1002, 0
        %v1022 = vsel %vm315, %v1003, 0
        %v1025 = vsel %vm315, %v1004, 0
        %v1028 = vsel %vm315, %v1005, 0
        %1030 = vmatprep.subr.mxu0 %v666
        %1031 = vmatpush1.msra.mxu0 %v665
        %1032 = vmatprep.subr.mxu0 %v668
        %1033 = vmatpush1.msra.mxu0 %v667
        %1034 = vmatprep.subr.mxu0 %v670
        %1035 = vmatpush1.msra.mxu0 %v669
        %1036 = vmatprep.subr.mxu0 %v672
        %1037 = vmatpush1.msra.mxu0 %v671
        %1038 = vmatprep.subr.mxu0 0.0
        %1039 = vmatpush1.msra.mxu0 0.0
        %1040 = vmatprep.subr.mxu0 0.0
        %1041 = vmatpush1.msra.mxu0 0.0
        %1042 = vmatprep.subr.mxu0 0.0
        %1043 = vmatpush1.msra.mxu0 0.0
        %1044 = vmatprep.subr.mxu0 0.0
        %1045 = vmatpush1.msra.mxu0 0.0
        %1046 = vmatprep.subr.mxu0 0.0
        %1047 = vmatpush1.msra.mxu0 0.0
        %1048 = vmatprep.subr.mxu0 0.0
        %1049 = vmatpush1.msra.mxu0 0.0
        %1050 = vmatprep.subr.mxu0 0.0
        %1051 = vmatpush1.msra.mxu0 0.0
        %1052 = vmatprep.subr.mxu0 0.0
        %1053 = vmatpush1.msra.mxu0 0.0
        %1054 = vmatprep.subr.mxu0 0.0
        %1055 = vmatpush1.msra.mxu0 0.0
        %1056 = vmatprep.subr.mxu0 0.0
        %1057 = vmatpush1.msra.mxu0 0.0
        %1058 = vmatprep.subr.mxu0 0.0
        %1059 = vmatpush1.msra.mxu0 0.0
        %1060 = vmatprep.subr.mxu0 0.0
        %1061 = vmatpush1.msra.mxu0 0.0
        %1062 = vmatprep.subr.mxu0 0.0
        %1063 = vmatpush1.msra.mxu0 0.0
        %1064 = vmatprep.subr.mxu0 0.0
        %1065 = vmatpush1.msra.mxu0 0.0
        %1066 = vmatprep.subr.mxu0 0.0
        %1067 = vmatpush1.msra.mxu0 0.0
        %1068 = vmatprep.subr.mxu0 0.0
        %1069 = vmatpush1.msra.mxu0 0.0
        %1070 = vmatprep.subr.mxu0 0.0
        %1071 = vmatpush1.msra.mxu0 0.0
        %1072 = vmatprep.subr.mxu0 0.0
        %1073 = vmatpush1.msra.mxu0 0.0
        %1074 = vmatprep.subr.mxu0 0.0
        %1075 = vmatpush1.msra.mxu0 0.0
        %1076 = vmatprep.subr.mxu0 0.0
        %1077 = vmatpush1.msra.mxu0 0.0
        %1078 = vmatprep.subr.mxu0 0.0
        %1079 = vmatpush1.msra.mxu0 0.0
        %1080 = vmatprep.subr.mxu0 0.0
        %1081 = vmatpush1.msra.mxu0 0.0
        %1082 = vmatprep.subr.mxu0 0.0
        %1083 = vmatpush1.msra.mxu0 0.0
        %1084 = vmatprep.subr.mxu0 0.0
        %1085 = vmatpush1.msra.mxu0 0.0
        %1086 = vmatprep.subr.mxu0 0.0
        %1087 = vmatpush1.msra.mxu0 0.0
        %1088 = vmatprep.subr.mxu0 0.0
        %1089 = vmatpush1.msra.mxu0 0.0
        %1090 = vmatprep.subr.mxu0 0.0
        %1091 = vmatpush1.msra.mxu0 0.0
        %1092 = vmatprep.subr.mxu0 0.0
        %1093 = vmatpush1.msra.mxu0 0.0
        %1094 = vmatprep.mubr.f32.mxu0 0.0
        %1095 = vmatmul.mubr.f32.gmra.mrb[0].mxu0 %v1019
        %v1096 = vpop.f32.mrb[0].mxu0
        %v1097 = vadd.f32 0.0, %v1096
        %v1098 = vpop.f32.mrb[0].mxu0
        %v1099 = vadd.f32 0.0, %v1098
        %1100 = vmatprep.mubr.f32.mxu0 0.0
        %1101 = vmatmul.mubr.f32.gmra.mrb[0].mxu0 %v1022
        %v1102 = vpop.f32.mrb[0].mxu0
        %v1103 = vadd.f32 0.0, %v1102
        %v1104 = vpop.f32.mrb[0].mxu0
        %v1105 = vadd.f32 0.0, %v1104
        %1106 = vmatprep.mubr.f32.mxu0 0.0
        %1107 = vmatmul.mubr.f32.gmra.mrb[0].mxu0 %v1025
        %v1108 = vpop.f32.mrb[0].mxu0
        %v1109 = vadd.f32 0.0, %v1108
        %v1110 = vpop.f32.mrb[0].mxu0
        %v1111 = vadd.f32 0.0, %v1110
        %1112 = vmatprep.mubr.f32.mxu0 0.0
        %1113 = vmatmul.mubr.f32.gmra.mrb[0].mxu0 %v1028
        %v1114 = vpop.f32.mrb[0].mxu0
        %v1115 = vadd.f32 0.0, %v1114
        %v1116 = vpop.f32.mrb[0].mxu0
        %v1117 = vadd.f32 0.0, %v1116
        %1118 = vdwg.mxu0
        %1120 = vset.pattern.permute.xlu0 0
        %1121 = vperm.xlu0 %1120, %v493
        %v1122 = vpop.permute.xlu0 %1121
        %1125 = vset.pattern.permute.xlu0 0
        %1126 = vperm.xlu0 %1125, %v494
        %v1127 = vpop.permute.xlu0 %1126
        %1130 = vset.pattern.permute.xlu0 0
        %1131 = vperm.xlu0 %1130, %v495
        %v1132 = vpop.permute.xlu0 %1131
        %1135 = vset.pattern.permute.xlu0 0
        %1136 = vperm.xlu0 %1135, %v496
        %v1137 = vpop.permute.xlu0 %1136
        %v1139 = vadd.f32 %v223, %v1122
        %v1140 = vadd.f32 %v224, %v1122
        %v1141 = vadd.f32 %v225, %v1127
        %v1142 = vadd.f32 %v226, %v1127
        %v1143 = vadd.f32 %v227, %v1132
        %v1144 = vadd.f32 %v228, %v1132
        %v1145 = vadd.f32 %v229, %v1137
        %v1146 = vadd.f32 %v230, %v1137
        %v1147 = vadd.f32 %v1139, %v1097
        %v1148 = vadd.f32 %v1140, %v1099
        %v1149 = vadd.f32 %v1141, %v1103
        %v1150 = vadd.f32 %v1142, %v1105
        %v1151 = vadd.f32 %v1143, %v1109
        %v1152 = vadd.f32 %v1144, %v1111
        %v1153 = vadd.f32 %v1145, %v1115
        %v1154 = vadd.f32 %v1146, %v1117
        %1155 = vst [vmem:[%s217] sm:$0xff] %v1147
        %1156 = vst [vmem:[%s217 + $0x8] sm:$0xff] %v1148
        %1157 = vst [vmem:[%s217 + $0x10] sm:$0xff] %v1149
        %1158 = vst [vmem:[%s217 + $0x18] sm:$0xff] %v1150
        %1159 = vst [vmem:[%s217 + $0x20] sm:$0xff] %v1151
        %1160 = vst [vmem:[%s217 + $0x28] sm:$0xff] %v1152
        %1161 = vst [vmem:[%s217 + $0x30] sm:$0xff] %v1153
        %1162 = vst [vmem:[%s217 + $0x38] sm:$0xff] %v1154
        %s1163 = sand.u32 %s137, 1
        %s1164 = scalar_lea.sflag [#allocation3], %s1163
        %s1165 = sand.u32 %s137, 1
        %s1166 = smul.addr %s1165, 64
        %s1167 = scalar_lea.vmem [#allocation2], %s1166
        // Predicated region
        $region41: #{tpu_custom_call.1} parent=39 // pred_check
          %p1168 = pneg %p147
        $region42: #{tpu_custom_call.1} parent=39 // pred_check_branch
          %1170 = sbr.rel (%p1168) target = $region44
        $region43: #{tpu_custom_call.1} parent=39 // pred_region
          %s1172 = ssub.s32 1024, 1024
          %1173 = vsyncadd %s1164, %s1172
          %s1174 = smul.addr %s19, 8
          %s1175 = smul.addr %s1174, 128
          %s1176 = scalar_lea.hbm %s5, %s1175
          %s1177 = sshll.u32 %s1167, 4
          %s1178 = int_to_ptr.vmem [resolvable:$true] %s1177
          %1183 = dma.vmem_to_hbm [thread:$0]  %s1178, 1024, %s1176, %s1164, 256, 256, 16
        $region44: #{tpu_custom_call.1} parent=39 // pred_fallthru
          _
      $region40: #{tpu_custom_call.1} parent=5 // pred_fallthru
        _
      %p1184 = scmp.le.s32.totalorder 2, %s14
      // Predicated region
      $region45: #{tpu_custom_call.1} parent=5 // pred_check
        %p1185 = pneg %p1184
      $region46: #{tpu_custom_call.1} parent=5 // pred_check_branch
        %1187 = sbr.rel (%p1185) target = $region48
      $region47: #{tpu_custom_call.1} parent=5 // pred_region
        %s1188 = ssub.s32 %s14, 2
        // Predicated region
        $region49: #{tpu_custom_call.1} parent=47 // pred_check
          %p1189 = pneg %p153
        $region50: #{tpu_custom_call.1} parent=47 // pred_check_branch
          %1191 = sbr.rel (%p1189) target = $region52
        $region51: #{tpu_custom_call.1} parent=47 // pred_region
          %s1192 = sand.u32 %s138, 1
          %s1193 = scalar_lea.sflag [#allocation3], %s1192
          %s1194 = sand.u32 %s138, 1
          %s1195 = smul.addr %s1194, 64
          %s1196 = scalar_lea.vmem [#allocation2], %s1195
          %1197 = dma.done %s1193, 1024
        $region52: #{tpu_custom_call.1} parent=47 // pred_fallthru
          _
      $region48: #{tpu_custom_call.1} parent=5 // pred_fallthru
        _
    $region6: #{tpu_custom_call.1} parent=1 // loop_footer
      %s18 = sadd.s32 1, %s14
    $region7: #{tpu_custom_call.1} parent=1 // loop_footer_branch
      %13 = sbr.rel target = $region3
    $region8: #{tpu_custom_call.1} parent=1 // loop_exit
      _
    %1198 = vsyncpa [#allocation3], 1
    %s1199 = scalar_lea.sflag [#allocation3], 1
    %1200 = vsyncpa %s1199, 1

</llo_original>
